<compile_context>
chip_gen: v5e
topology: v5e:2x2
jax: 0.10.0
libtpu: 0.0.40
codegen_flags: <defaults>
</compile_context>

<pallas_src>
import jax
import jax.numpy as jnp
from jax.experimental import pallas as pl
from jax.experimental.pallas import tpu as pltpu


def encoder_kernel(x_ref, w_ref, b_ref, o_ref):
    # x_ref: (TM, TK) input dtype    w_ref: (TK, TN) bf16
    # b_ref: (1, TN)  f32            o_ref: (TM, TN) f32 (VMEM-resident over k)
    k = pl.program_id(2)

    @pl.when(k == 0)
    def _():
        o_ref[...] = jnp.zeros_like(o_ref)

    # Cast to bf16 just before the MXU dot; accumulate in f32 into the output
    # tile itself (no separate scratch accumulator).
    o_ref[...] += jnp.dot(
        x_ref[...].astype(jnp.bfloat16),
        w_ref[...].astype(jnp.bfloat16),
        preferred_element_type=jnp.float32,
    )

    @pl.when(k == pl.num_programs(2) - 1)
    def _():
        o_ref[...] = jnp.maximum(o_ref[...] + b_ref[...], 0.0)


def _pick_tile(dim, max_tile, align):
    """Largest tile <= max_tile that divides `dim` and is a multiple of `align`,
    or the full dim (always a legal block shape) when dim is small/indivisible."""
    if dim <= max_tile:
        return dim
    t = (max_tile // align) * align
    while t >= align:
        if dim % t == 0:
            return t
        t -= align
    return dim


def encoder_forward(x, w, b):
    """x: (B, din); w: (din, hidden) (ideally stored bf16); b: (hidden,).
    Returns relu(x @ w + b) as float32."""
    B, din = x.shape
    hidden = w.shape[1]

    # Tiles aligned to the (8, 128) layout constraints; lane-dense output.
    TM = _pick_tile(B, 1024, 8)         # batch rows (sublanes)
    TN = _pick_tile(hidden, 512, 128)   # output features (lanes)
    TK = _pick_tile(din, 512, 128)      # reduction (last grid axis)

    # v7x has 2 TensorCores: ensure at least one "parallel" axis has >1 block
    # so dimension_semantics can shard the grid across them.
    if B // TM == 1 and hidden // TN == 1:
        if TN >= 256 and (TN // 2) % 128 == 0 and hidden % (TN // 2) == 0:
            TN //= 2
        elif TM >= 16 and (TM // 2) % 8 == 0 and B % (TM // 2) == 0:
            TM //= 2

    grid = (B // TM, hidden // TN, din // TK)

    b2d = b.astype(jnp.float32).reshape(1, hidden)

    x_bytes = jnp.dtype(x.dtype).itemsize
    w_bytes = jnp.dtype(w.dtype).itemsize
    # Auto-pipeline double-buffers every operand; the f32 output tile doubles
    # as the accumulator (no extra scratch).
    vmem_needed = 2 * (TM * TK * x_bytes + TK * TN * w_bytes + TN * 4 + TM * TN * 4)

    # Generation-aware VMEM cap, leaving headroom for compiler scratch.
    try:
        vmem_phys = pltpu.get_tpu_info().vmem_capacity_bytes
    except Exception:  # pragma: no cover - conservative fallback
        vmem_phys = 64 << 20
    vmem_cap = min(vmem_phys - (24 << 20), 100 << 20)  # ~40 MiB v7x, ~100 MiB v5e/v6e
    assert vmem_needed <= vmem_cap, (
        f"tile working set {vmem_needed / 2**20:.1f} MiB exceeds VMEM cap "
        f"{vmem_cap / 2**20:.1f} MiB; pick smaller tiles for these shapes"
    )
    vmem_limit = int(min(max(vmem_needed + (4 << 20), 16 << 20), vmem_cap))

    return pl.pallas_call(
        encoder_kernel,
        out_shape=jax.ShapeDtypeStruct((B, hidden), jnp.float32),
        grid=grid,
        in_specs=[
            pl.BlockSpec((TM, TK), lambda i, j, k: (i, k)),   # x tile
            # W tile (i-independent). If xprof shows exposed DMA here, add
            # pipeline_mode=pl.Buffered(3) and sweep 2-3.
            pl.BlockSpec((TK, TN), lambda i, j, k: (k, j)),
            pl.BlockSpec((1, TN), lambda i, j, k: (0, j)),    # bias tile
        ],
        out_specs=pl.BlockSpec((TM, TN), lambda i, j, k: (i, j)),
        compiler_params=pltpu.CompilerParams(
            dimension_semantics=("parallel", "parallel", "arbitrary"),
            vmem_limit_bytes=vmem_limit,
        ),
    )(x, w, b2d)


def init_encoder_params(key, din=32, hidden_dim=128):
    # nn.Linear-style init: U(-1/sqrt(din), 1/sqrt(din)).
    # Weights are stored persistently in bf16 so no per-call cast pass is needed.
    kw, kb = jax.random.split(key)
    bound = 1.0 / (din ** 0.5)
    w = jax.random.uniform(kw, (din, hidden_dim), jnp.float32, -bound, bound)
    b = jax.random.uniform(kb, (hidden_dim,), jnp.float32, -bound, bound)
    return w.astype(jnp.bfloat16), b


if __name__ == "__main__":
    din, hidden_dim, batch = 32, 128, 8

    key = jax.random.PRNGKey(0)
    kx, kp = jax.random.split(key)
    x = jax.random.normal(kx, (batch, din), jnp.float32)
    w, b = init_encoder_params(kp, din, hidden_dim)   # w is bf16, b is f32

    out = encoder_forward(x, w, b)
    out = jax.block_until_ready(out)

    # Reference with the same bf16-rounded operands and f32 accumulation
    # (same math as PyTorch F.relu(self.fc(x)) up to bf16 quantization).
    x_bf = x.astype(jnp.bfloat16).astype(jnp.float32)
    w_f = w.astype(jnp.float32)
    ref = jnp.maximum(x_bf @ w_f + b, 0.0)

    assert out.shape == (batch, hidden_dim)
    assert out.dtype == jnp.float32
    assert jnp.allclose(out, ref, atol=1e-3, rtol=1e-3)

    # Also stay close to f32-input math (only bf16 input/weight quantization).
    ref_f32 = jnp.maximum(x @ w_f + b, 0.0)
    assert jnp.allclose(out, ref_f32, atol=5e-2, rtol=5e-2)

    print("KERNEL_OK")
</pallas_src>

<mosaic_0001>
module attributes {stable_mosaic.version = 11 : i64} {
  func.func @encoder_kernel(%arg0: i32, %arg1: i32, %arg2: i32, %arg3: memref<8x32xf32, #tpu.memory_space<vmem>>, %arg4: memref<32x128xbf16, #tpu.memory_space<vmem>>, %arg5: memref<1x128xf32, #tpu.memory_space<vmem>>, %arg6: memref<8x128xf32, #tpu.memory_space<vmem>>) attributes {dimension_semantics = [#tpu.dimension_semantics<parallel>, #tpu.dimension_semantics<parallel>, #tpu.dimension_semantics<arbitrary>], iteration_bounds = array<i64: 1, 1, 1>, scalar_prefetch = 0 : i64, scratch_operands = 0 : i64, tpu.core_type = #tpu.core_type<tc>, window_params = [{transform_indices = @transform_0, window_bounds = array<i64: 8, 32>}, {transform_indices = @transform_1, window_bounds = array<i64: 32, 128>}, {transform_indices = @transform_2, window_bounds = array<i64: 1, 128>}, {transform_indices = @transform_3, window_bounds = array<i64: 8, 128>}]} {
    %c0_i32 = arith.constant 0 : i32
    %0 = arith.cmpi eq, %arg2, %c0_i32 : i32
    %1 = arith.extui %0 : i1 to i32
    %c0_i32_0 = arith.constant 0 : i32
    %2 = arith.cmpi ne, %1, %c0_i32_0 : i32
    scf.if %2 {
      %cst_10 = arith.constant 0.000000e+00 : f32
      %13 = vector.broadcast %cst_10 : f32 to vector<8x128xf32>
      %c0_11 = arith.constant 0 : index
      %c0_12 = arith.constant 0 : index
      %14 = vector.load %arg6[%c0_11, %c0_12] : memref<8x128xf32, #tpu.memory_space<vmem>>, vector<8x128xf32>
      tpu.vector_store %arg6[%c0_11, %c0_12], %13 {strides = array<i32>} : memref<8x128xf32, #tpu.memory_space<vmem>>, vector<8x128xf32>,
    } else {
    }
    %c0 = arith.constant 0 : index
    %c0_1 = arith.constant 0 : index
    %3 = vector.load %arg6[%c0, %c0_1] : memref<8x128xf32, #tpu.memory_space<vmem>>, vector<8x128xf32>
    %c0_2 = arith.constant 0 : index
    %c0_3 = arith.constant 0 : index
    %4 = vector.load %arg3[%c0_2, %c0_3] : memref<8x32xf32, #tpu.memory_space<vmem>>, vector<8x32xf32>
    %5 = arith.truncf %4 : vector<8x32xf32> to vector<8x32xbf16>
    %c0_4 = arith.constant 0 : index
    %c0_5 = arith.constant 0 : index
    %6 = vector.load %arg4[%c0_4, %c0_5] : memref<32x128xbf16, #tpu.memory_space<vmem>>, vector<32x128xbf16>
    %cst = arith.constant dense<0.000000e+00> : vector<8x128xf32>
    %7 = tpu.matmul %5, %6, %cst {dimension_numbers = #tpu.dot_dimension_numbers<[1], [0], [0], [1], [0, 0, 1, 1], [], []>} : vector<8x32xbf16>, vector<32x128xbf16>, vector<8x128xf32> -> vector<8x128xf32>
    %8 = arith.addf %3, %7 : vector<8x128xf32>
    %c0_6 = arith.constant 0 : index
    %c0_7 = arith.constant 0 : index
    %9 = vector.load %arg6[%c0_6, %c0_7] : memref<8x128xf32, #tpu.memory_space<vmem>>, vector<8x128xf32>
    tpu.vector_store %arg6[%c0_6, %c0_7], %8 {strides = array<i32>} : memref<8x128xf32, #tpu.memory_space<vmem>>, vector<8x128xf32>,
    %c0_i32_8 = arith.constant 0 : i32
    %10 = arith.cmpi eq, %arg2, %c0_i32_8 : i32
    %11 = arith.extui %10 : i1 to i32
    %c0_i32_9 = arith.constant 0 : i32
    %12 = arith.cmpi ne, %11, %c0_i32_9 : i32
    scf.if %12 {
      %c0_10 = arith.constant 0 : index
      %c0_11 = arith.constant 0 : index
      %13 = vector.load %arg6[%c0_10, %c0_11] : memref<8x128xf32, #tpu.memory_space<vmem>>, vector<8x128xf32>
      %c0_12 = arith.constant 0 : index
      %c0_13 = arith.constant 0 : index
      %14 = vector.load %arg5[%c0_12, %c0_13] : memref<1x128xf32, #tpu.memory_space<vmem>>, vector<1x128xf32>
      %15 = vector.broadcast %14 : vector<1x128xf32> to vector<8x128xf32>
      %16 = arith.addf %13, %15 : vector<8x128xf32>
      %cst_14 = arith.constant 0.000000e+00 : f32
      %17 = vector.broadcast %cst_14 : f32 to vector<8x128xf32>
      %18 = arith.maximumf %16, %17 : vector<8x128xf32>
      %c0_15 = arith.constant 0 : index
      %c0_16 = arith.constant 0 : index
      %19 = vector.load %arg6[%c0_15, %c0_16] : memref<8x128xf32, #tpu.memory_space<vmem>>, vector<8x128xf32>
      tpu.vector_store %arg6[%c0_15, %c0_16], %18 {strides = array<i32>} : memref<8x128xf32, #tpu.memory_space<vmem>>, vector<8x128xf32>,
    } else {
    }
    return
  }
  func.func @transform_0(%arg0: i32, %arg1: i32, %arg2: i32) -> (i32, i32) {
    %c0_i32 = arith.constant 0 : i32
    return %arg0, %arg2 : i32, i32
  }
  func.func @transform_1(%arg0: i32, %arg1: i32, %arg2: i32) -> (i32, i32) {
    %c0_i32 = arith.constant 0 : i32
    return %arg2, %arg1 : i32, i32
  }
  func.func @transform_2(%arg0: i32, %arg1: i32, %arg2: i32) -> (i32, i32) {
    %c0_i32 = arith.constant 0 : i32
    %c0_i32_0 = arith.constant 0 : i32
    return %c0_i32, %arg1 : i32, i32
  }
  func.func @transform_3(%arg0: i32, %arg1: i32, %arg2: i32) -> (i32, i32) {
    %c0_i32 = arith.constant 0 : i32
    return %arg0, %arg1 : i32, i32
  }
}

</mosaic_0001>

<llo_original>
// kernel: tpu_custom_call.1
$region0: #{tpu_custom_call.1}
  #allocation0 [shape = 'u32[]', space=smem, size = 0x4, offset = 0x4, fixed_abs, tag = 'smem constant byte address 0x4 - core index']
  #allocation1 [shape = 'u32[72,128]{1,0:T(1,128)}', space=vmem, size = 0x9000, scoped, tag = 'internal scratch']
  %s0 = inlined_call_operand.hbm [shape: f32[8,32], index: 0, kind: input, shape index: {}]
  %s1 = inlined_call_operand.hbm [shape: bf16[32,128], index: 1, kind: input, shape index: {}]
  %s2 = inlined_call_operand.vmem [shape: f32[1,128], index: 2, kind: input, shape index: {}]
  %s3 = inlined_call_operand.hbm [shape: f32[8,128], index: 3, kind: output, shape index: {}]
  %s4 = sld [smem:[#allocation0]]
  $region38: #{tpu_custom_call.1} parent=0
    _
  %s6 = ssub.s32 1, %s4
  %s7 = scalar_select 0, %s6, %s4
  $region1: #{tpu_custom_call.1} parent=0
    #allocation2 [shape = 'u8[4096]{0}', space=vmem, size = 0x1000, scoped, tag = 'input window, operand 0, single buffered']
    #allocation3 [shape = 's32[1]{0}', space=sflag, size = 0x4, scoped, tag = 'scoped memory for tpu_custom_call.1']
    #allocation4 [shape = 's32[1]{0}', space=sflag, size = 0x4, scoped, tag = 'scoped memory for tpu_custom_call.1']
    #allocation5 [shape = 'u8[8192]{0}', space=vmem, size = 0x2000, scoped, tag = 'input window, operand 1, single buffered']
    #allocation6 [shape = 's32[1]{0}', space=sflag, size = 0x4, scoped, tag = 'scoped memory for tpu_custom_call.1']
    #allocation7 [shape = 'u8[4096]{0}', space=vmem, size = 0x1000, scoped, tag = 'output window, operand 0, single buffered']
    %8 = vsyncpa [#allocation3], 0
    %9 = vsyncpa [#allocation6], 0
    %10 = vsyncpa [#allocation4], 0
    // Predicated region
    $region2: #{tpu_custom_call.1} parent=1 // pred_check
      _
    $region3: #{tpu_custom_call.1} parent=1 // pred_check_branch
      %12 = sbr.rel (0) target = $region5
    $region4: #{tpu_custom_call.1} parent=1 // pred_region
      %14 = vsyncadd [#allocation3], 0
      %s16 = sshll.u32 %s0, 4
      %s17 = int_to_ptr.hbm [resolvable:$true] %s16
      %s18 = sshll.u32 [#allocation2], 4
      %s19 = int_to_ptr.vmem [resolvable:$true] %s18
      %21 = dma.hbm_to_vmem [thread:$0]  %s17, 128, %s19, [#allocation3]
    $region5: #{tpu_custom_call.1} parent=1 // pred_fallthru
      _
    // Predicated region
    $region6: #{tpu_custom_call.1} parent=1 // pred_check
      _
    $region7: #{tpu_custom_call.1} parent=1 // pred_check_branch
      %23 = sbr.rel (0) target = $region9
    $region8: #{tpu_custom_call.1} parent=1 // pred_region
      %25 = vsyncadd [#allocation6], 0
      %s26 = sshll.u32 %s1, 4
      %s27 = int_to_ptr.hbm [resolvable:$true] %s26
      %s28 = sshll.u32 [#allocation5], 4
      %s29 = int_to_ptr.vmem [resolvable:$true] %s28
      %34 = dma.hbm_to_vmem [thread:$0]  %s27, 256, %s29, [#allocation6], 64, 64, 4
    $region9: #{tpu_custom_call.1} parent=1 // pred_fallthru
      _
    // Predicated region
    $region10: #{tpu_custom_call.1} parent=1 // pred_check
      _
    $region11: #{tpu_custom_call.1} parent=1 // pred_check_branch
      %36 = sbr.rel (0) target = $region13
    $region12: #{tpu_custom_call.1} parent=1 // pred_region
      _
    $region13: #{tpu_custom_call.1} parent=1 // pred_fallthru
      _
    // Predicated region
    $region14: #{tpu_custom_call.1} parent=1 // pred_check
      _
    $region15: #{tpu_custom_call.1} parent=1 // pred_check_branch
      %38 = sbr.rel (0) target = $region17
    $region16: #{tpu_custom_call.1} parent=1 // pred_region
      %40 = dma.done [#allocation3], 128
    $region17: #{tpu_custom_call.1} parent=1 // pred_fallthru
      _
    // Predicated region
    $region18: #{tpu_custom_call.1} parent=1 // pred_check
      _
    $region19: #{tpu_custom_call.1} parent=1 // pred_check_branch
      %42 = sbr.rel (0) target = $region21
    $region20: #{tpu_custom_call.1} parent=1 // pred_region
      %44 = dma.done [#allocation6], 256
    $region21: #{tpu_custom_call.1} parent=1 // pred_fallthru
      _
    %p46 = scmp.eq.s32.totalorder 0, 0
    // Predicated region
    $region22: #{tpu_custom_call.1} parent=1 // pred_check
      %p47 = pneg %p46
    $region23: #{tpu_custom_call.1} parent=1 // pred_check_branch
      %49 = sbr.rel (%p47) target = $region25
    $region24: #{tpu_custom_call.1} parent=1 // pred_region
      %50 = vst [vmem:[#allocation7] sm:$0xff] 0.0
    $region25: #{tpu_custom_call.1} parent=1 // pred_fallthru
      _
    %v51 = vld [vmem:[#allocation7] sm:$0xff]
    %v52 = vld [vmem:[#allocation2] sm:$0xff]
    %v53 = vpack.c.bf16 %v52, %v52
    %v54 = vld [vmem:[#allocation5] sm:$0xf]
    %v55 = vld [vmem:[#allocation5 + $0x4] sm:$0xf]
    %v56 = vld [vmem:[#allocation5 + $0x8] sm:$0xf]
    %v57 = vld [vmem:[#allocation5 + $0xc] sm:$0xf]
    %v62 = vunpack.c.l.b16 %v54
    %v63 = vunpack.c.l.b16 %v55
    %v64 = vunpack.c.l.b16 %v56
    %v65 = vunpack.c.l.b16 %v57
    %v66 = vpack.c.b16 %v63, %v62
    %v67 = vpack.c.b16 %v65, %v64
    %vm70 = vcmask 261120
    %v72 = vsel %vm70, %v53, 0
    %74 = vmatpush.bf16.msra.mxu0 0
    %75 = vmatpush.bf16.msra.mxu0 0
    %76 = vmatpush.bf16.msra.mxu0 0
    %77 = vmatpush.bf16.msra.mxu0 0
    %78 = vmatpush.bf16.msra.mxu0 0
    %79 = vmatpush.bf16.msra.mxu0 0
    %80 = vmatpush.bf16.msra.mxu0 %v67
    %81 = vmatpush.bf16.msra.mxu0 %v66
    %82 = vmatmul.bf16.gmra.mxu0 %v72
    %v83 = vpop.f32.mrf.mxu0
    %v84 = vadd.f32 0.0, %v83
    %v85 = vpop.f32.mrf.mxu0
    %86 = vdwg.mxu0
    %v87 = vadd.f32 %v51, %v84
    %88 = vst [vmem:[#allocation7] sm:$0xff] %v87
    // Predicated region
    $region26: #{tpu_custom_call.1} parent=1 // pred_check
      %p89 = pneg %p46
    $region27: #{tpu_custom_call.1} parent=1 // pred_check_branch
      %91 = sbr.rel (%p89) target = $region29
    $region28: #{tpu_custom_call.1} parent=1 // pred_region
      %v92 = vld [vmem:[#allocation7] sm:$0xff]
      %v93 = vld [vmem:[%s2] sm:$0x1]
      %v95 = vperm.slane %v93, 0
      %v97 = vadd.f32 %v92, %v95
      %v98 = vmax.f32 %v97, 0.0
      %99 = vst [vmem:[#allocation7] sm:$0xff] %v98
    $region29: #{tpu_custom_call.1} parent=1 // pred_fallthru
      _
    // Predicated region
    $region30: #{tpu_custom_call.1} parent=1 // pred_check
      _
    $region31: #{tpu_custom_call.1} parent=1 // pred_check_branch
      %101 = sbr.rel (0) target = $region33
    $region32: #{tpu_custom_call.1} parent=1 // pred_region
      %103 = vsyncadd [#allocation4], 0
      %s105 = sshll.u32 [#allocation7], 4
      %s106 = int_to_ptr.vmem [resolvable:$true] %s105
      %s107 = sshll.u32 %s3, 4
      %s108 = int_to_ptr.hbm [resolvable:$true] %s107
      %110 = dma.vmem_to_hbm [thread:$0]  %s106, 128, %s108, [#allocation4]
    $region33: #{tpu_custom_call.1} parent=1 // pred_fallthru
      _
    // Predicated region
    $region34: #{tpu_custom_call.1} parent=1 // pred_check
      _
    $region35: #{tpu_custom_call.1} parent=1 // pred_check_branch
      %112 = sbr.rel (0) target = $region37
    $region36: #{tpu_custom_call.1} parent=1 // pred_region
      %114 = dma.done [#allocation4], 128
    $region37: #{tpu_custom_call.1} parent=1 // pred_fallthru
      _
    %115 = vsyncpa [#allocation3], 1
    %116 = vsyncpa [#allocation6], 1
    %117 = vsyncpa [#allocation4], 1

</llo_original>
